<compile_context>
chip_gen: v5e
topology: v5e:2x2
jax: 0.10.0
libtpu: 0.0.40
codegen_flags: <defaults>
</compile_context>

<pallas_src>
import functools

import jax
import jax.numpy as jnp
from jax import lax
from jax.experimental import pallas as pl
from jax.experimental.pallas import tpu as pltpu


# ----------------------------------------------------------------------------
# Linear projection kernel:  out = x @ W^T + b   (PyTorch nn.Linear semantics)
# Row-tiled; weights / bias are full blocks reused every grid step.
# ----------------------------------------------------------------------------
def _linear_kernel(x_ref, w_ref, b_ref, o_ref):
    # Transpose-free: contract last dim of x with last dim of w ( == x @ w.T ).
    acc = lax.dot_general(
        x_ref[...], w_ref[...],
        dimension_numbers=(((1,), (1,)), ((), ())),
        preferred_element_type=jnp.float32,
    )
    o_ref[...] = (acc + b_ref[...]).astype(o_ref.dtype)


def _pick_divisor(total, candidates):
    for c in candidates:
        if c <= total and total % c == 0:
            return c
    return total


def pallas_linear(x, w, b, *, tile_m=None):
    """x: [M, Ein], w: [Eout, Ein] (PyTorch layout), b: [Eout] -> [M, Eout]."""
    M, Ein = x.shape
    Eout = w.shape[0]
    if tile_m is None:
        tile_m = _pick_divisor(M, (512, 256, 128, 64, 32, 16, 8))
    grid = (M // tile_m,)
    return pl.pallas_call(
        _linear_kernel,
        grid=grid,
        out_shape=jax.ShapeDtypeStruct((M, Eout), x.dtype),
        in_specs=[
            pl.BlockSpec((tile_m, Ein), lambda i: (i, 0)),   # row tile of x
            pl.BlockSpec((Eout, Ein), lambda i: (0, 0)),     # full weight, reused
            pl.BlockSpec((1, Eout), lambda i: (0, 0)),       # bias, reused
        ],
        out_specs=pl.BlockSpec((tile_m, Eout), lambda i: (i, 0)),
        compiler_params=pltpu.CompilerParams(dimension_semantics=("parallel",)),
    )(x, w, b.reshape(1, Eout))


# ----------------------------------------------------------------------------
# Scaled dot-product attention kernels.
#   q block : [G, TQ, D]   k/v blocks : [G, S, D]   (G = heads per grid step)
#   outputs : attention out [G, TQ, D], probs [G, TQ, S]
# ----------------------------------------------------------------------------
def _softmax_pv(s, v_ref, o_ref, p_ref):
    s = s - jnp.max(s, axis=-1, keepdims=True)
    e = jnp.exp(s)
    denom = jnp.sum(e, axis=-1, keepdims=True)
    inv = pl.reciprocal(denom, approx=True)       # EUP slot (otherwise idle)
    inv = inv * (2.0 - denom * inv)               # one Newton step: ~full f32 accuracy
    p = e * inv
    p_ref[...] = p.astype(p_ref.dtype)
    o_ref[...] = jnp.einsum(
        "gts,gsd->gtd", p.astype(v_ref.dtype), v_ref[...],
        preferred_element_type=jnp.float32,
    ).astype(o_ref.dtype)


def _attn_kernel(q_ref, k_ref, v_ref, o_ref, p_ref, *, scale):
    q = q_ref[...] * scale
    s = jnp.einsum("gtd,gsd->gts", q, k_ref[...],
                   preferred_element_type=jnp.float32)
    _softmax_pv(s, v_ref, o_ref, p_ref)


def _attn_kernel_masked(q_ref, k_ref, v_ref, m_ref, o_ref, p_ref, *, scale):
    q = q_ref[...] * scale
    s = jnp.einsum("gtd,gsd->gts", q, k_ref[...],
                   preferred_element_type=jnp.float32)
    s = s + m_ref[...]          # [1 or G, TQ, S] broadcasts over the head group
    _softmax_pv(s, v_ref, o_ref, p_ref)


def _choose_sdpa_tiles(BH, T, S, D):
    TQ = _pick_divisor(T, (128, 64, 32, 16, 8))
    budget = 6 * 1024 * 1024   # rough per-step block budget (pipeline double-buffers)
    G = 1
    for g in (8, 4, 2, 1):
        if BH % g:
            continue
        blk_bytes = 4 * g * (2 * TQ * D + 2 * S * D + 2 * TQ * S)
        if blk_bytes <= budget or g == 1:
            G = g
            break
    return G, TQ


def pallas_sdpa(q_heads, k_heads, v_heads, attn_mask=None):
    """q_heads: [BH, T, D], k/v_heads: [BH, S, D].

    attn_mask: None, or bool [T, S] / [1, T, S] (shared) / [BH, T, S] (per head),
    True = position is NOT allowed to attend.
    Returns (out [BH, T, D], probs [BH, T, S] f32).
    """
    BH, T, D = q_heads.shape
    S = k_heads.shape[1]
    scale = float(D) ** -0.5
    G, TQ = _choose_sdpa_tiles(BH, T, S, D)
    grid = (BH // G, T // TQ)   # inner axis = query tiles -> K/V block reused across it

    q_spec = pl.BlockSpec((G, TQ, D), lambda b, t: (b, t, 0))
    k_spec = pl.BlockSpec((G, S, D), lambda b, t: (b, 0, 0))
    v_spec = pl.BlockSpec((G, S, D), lambda b, t: (b, 0, 0))
    o_spec = pl.BlockSpec((G, TQ, D), lambda b, t: (b, t, 0))
    p_spec = pl.BlockSpec((G, TQ, S), lambda b, t: (b, t, 0))
    out_shape = (
        jax.ShapeDtypeStruct((BH, T, D), q_heads.dtype),
        jax.ShapeDtypeStruct((BH, T, S), jnp.float32),
    )
    cparams = pltpu.CompilerParams(dimension_semantics=("parallel", "parallel"))

    if attn_mask is None:
        # Fast path: no mask ref at all -> zero mask HBM traffic.
        kernel = functools.partial(_attn_kernel, scale=scale)
        return pl.pallas_call(
            kernel, grid=grid, out_shape=out_shape,
            in_specs=[q_spec, k_spec, v_spec],
            out_specs=(o_spec, p_spec),
            compiler_params=cparams,
        )(q_heads, k_heads, v_heads)

    mask = attn_mask
    if mask.ndim == 2:
        mask = mask[None]
    add_mask = jnp.where(mask, jnp.float32(-1e8), jnp.float32(0.0))
    if add_mask.shape[0] == 1:
        m_spec = pl.BlockSpec((1, TQ, S), lambda b, t: (0, t, 0))      # shared mask
    else:
        assert add_mask.shape[0] == BH, "mask leading dim must be 1 or N*H"
        m_spec = pl.BlockSpec((G, TQ, S), lambda b, t: (b, t, 0))      # per-head mask

    kernel = functools.partial(_attn_kernel_masked, scale=scale)
    return pl.pallas_call(
        kernel, grid=grid, out_shape=out_shape,
        in_specs=[q_spec, k_spec, v_spec, m_spec],
        out_specs=(o_spec, p_spec),
        compiler_params=cparams,
    )(q_heads, k_heads, v_heads, add_mask)


# ----------------------------------------------------------------------------
# Full MultiHeadAttention forward (dropout=0.0 / eval mode)
# ----------------------------------------------------------------------------
def multi_head_attention(query, key, value, params, nhead, attn_mask=None,
                         batch_first=False):
    if batch_first:
        query = jnp.swapaxes(query, 0, 1)
        key = jnp.swapaxes(key, 0, 1)
        value = jnp.swapaxes(value, 0, 1)

    T, N, E = query.shape
    S = key.shape[0]
    H = nhead
    assert E % H == 0, "embed_dim must be divisible by the number of heads"
    D = E // H

    # Input projections (row-tiled Pallas matmul kernels).
    q = pallas_linear(query.reshape(T * N, E), params["wq"], params["bq"])
    k = pallas_linear(key.reshape(S * N, E), params["wk"], params["bk"])
    v = pallas_linear(value.reshape(S * N, E), params["wv"], params["bv"])

    # Heads-major layout for the SDPA kernel (same head ordering as the module's
    # reshape(L, N*H, D)).
    q_heads = q.reshape(T, N * H, D).transpose(1, 0, 2)   # [N*H, T, D]
    k_heads = k.reshape(S, N * H, D).transpose(1, 0, 2)   # [N*H, S, D]
    v_heads = v.reshape(S, N * H, D).transpose(1, 0, 2)   # [N*H, S, D]

    out_h, probs = pallas_sdpa(q_heads, k_heads, v_heads, attn_mask)

    # [N*H, T, D] -> [T, N, E], then output projection.
    attn_out = out_h.transpose(1, 0, 2).reshape(T * N, E)
    attn_out = pallas_linear(attn_out, params["wo"], params["bo"]).reshape(T, N, E)

    if batch_first:
        attn_out = jnp.swapaxes(attn_out, 0, 1)
    return attn_out, probs   # [T, N, E] (or [N, T, E]), [N*H, T, S]


# ----------------------------------------------------------------------------
# Pure-JAX reference for sanity checking
# ----------------------------------------------------------------------------
def reference_mha(query, key, value, params, nhead, attn_mask=None):
    T, N, E = query.shape
    S = key.shape[0]
    H = nhead
    D = E // H
    lin = lambda x, w, b: x @ w.T + b
    q = lin(query, params["wq"], params["bq"]).reshape(T, N * H, D)
    k = lin(key, params["wk"], params["bk"]).reshape(S, N * H, D)
    v = lin(value, params["wv"], params["bv"]).reshape(S, N * H, D)
    qh = q.transpose(1, 0, 2) * (float(D) ** -0.5)
    kh = k.transpose(1, 0, 2)
    vh = v.transpose(1, 0, 2)
    scores = jnp.einsum("btd,bsd->bts", qh, kh)
    if attn_mask is not None:
        m = attn_mask if attn_mask.ndim == 3 else attn_mask[None]
        scores = jnp.where(m, -1e8, scores)
    probs = jax.nn.softmax(scores, axis=-1)
    out = jnp.einsum("bts,bsd->btd", probs, vh)           # [N*H, T, D]
    out = out.transpose(1, 0, 2).reshape(T, N, E)
    out = lin(out, params["wo"], params["bo"])
    return out, probs


# ----------------------------------------------------------------------------
if __name__ == "__main__":
    # Small, module-consistent shapes: seq T=S=8, batch N=2, embed E=32, heads=4.
    T, S, N, E, H = 8, 8, 2, 32, 4

    key0 = jax.random.PRNGKey(0)
    ks = jax.random.split(key0, 12)

    def init_linear(kw, kb, fan_in, fan_out):
        bound = 1.0 / (fan_in ** 0.5)
        w = jax.random.uniform(kw, (fan_out, fan_in), jnp.float32, -bound, bound)
        b = jax.random.uniform(kb, (fan_out,), jnp.float32, -bound, bound)
        return w, b

    wq, bq = init_linear(ks[0], ks[1], E, E)
    wk, bk = init_linear(ks[2], ks[3], E, E)
    wv, bv = init_linear(ks[4], ks[5], E, E)
    wo, bo = init_linear(ks[6], ks[7], E, E)
    params = dict(wq=wq, bq=bq, wk=wk, bk=bk, wv=wv, bv=bv, wo=wo, bo=bo)

    query = jax.random.normal(ks[8], (T, N, E), jnp.float32)
    key_t = jax.random.normal(ks[9], (S, N, E), jnp.float32)
    value = jax.random.normal(ks[10], (S, N, E), jnp.float32)

    # --- no-mask path (mask-free kernel variant) ---
    out, probs = multi_head_attention(query, key_t, value, params, nhead=H)
    out = jax.block_until_ready(out)
    probs = jax.block_until_ready(probs)

    ref_out, ref_probs = reference_mha(query, key_t, value, params, nhead=H)
    assert out.shape == (T, N, E) and probs.shape == (N * H, T, S)
    assert jnp.allclose(out, ref_out, atol=2e-3, rtol=2e-3)
    assert jnp.allclose(probs, ref_probs, atol=1e-3, rtol=1e-2)

    # --- masked path (shared causal bool mask, True = blocked) ---
    causal = jnp.triu(jnp.ones((T, S), dtype=jnp.bool_), k=1)
    out_m, probs_m = multi_head_attention(query, key_t, value, params, nhead=H,
                                          attn_mask=causal)
    out_m = jax.block_until_ready(out_m)
    probs_m = jax.block_until_ready(probs_m)

    ref_out_m, ref_probs_m = reference_mha(query, key_t, value, params, nhead=H,
                                           attn_mask=causal)
    assert out_m.shape == (T, N, E) and probs_m.shape == (N * H, T, S)
    assert jnp.allclose(out_m, ref_out_m, atol=2e-3, rtol=2e-3)
    assert jnp.allclose(probs_m, ref_probs_m, atol=1e-3, rtol=1e-2)

    print("KERNEL_OK")
</pallas_src>

<mosaic_0001>
module attributes {stable_mosaic.version = 11 : i64} {
  func.func @_linear_kernel(%arg0: i32, %arg1: memref<16x32xf32, #tpu.memory_space<vmem>>, %arg2: memref<32x32xf32, #tpu.memory_space<vmem>>, %arg3: memref<1x32xf32, #tpu.memory_space<vmem>>, %arg4: memref<16x32xf32, #tpu.memory_space<vmem>>) attributes {dimension_semantics = [#tpu.dimension_semantics<parallel>], iteration_bounds = array<i64: 1>, scalar_prefetch = 0 : i64, scratch_operands = 0 : i64, tpu.core_type = #tpu.core_type<tc>, window_params = [{transform_indices = @transform_0, window_bounds = array<i64: 16, 32>}, {pipeline_mode = #tpu.pipeline_mode<synchronous>, transform_indices = @transform_1, window_bounds = array<i64: 32, 32>}, {pipeline_mode = #tpu.pipeline_mode<synchronous>, transform_indices = @transform_2, window_bounds = array<i64: 1, 32>}, {transform_indices = @transform_3, window_bounds = array<i64: 16, 32>}]} {
    %c0 = arith.constant 0 : index
    %c0_0 = arith.constant 0 : index
    %0 = vector.load %arg1[%c0, %c0_0] : memref<16x32xf32, #tpu.memory_space<vmem>>, vector<16x32xf32>
    %c0_1 = arith.constant 0 : index
    %c0_2 = arith.constant 0 : index
    %1 = vector.load %arg2[%c0_1, %c0_2] : memref<32x32xf32, #tpu.memory_space<vmem>>, vector<32x32xf32>
    %cst = arith.constant dense<0.000000e+00> : vector<16x32xf32>
    %2 = tpu.matmul %0, %1, %cst {dimension_numbers = #tpu.dot_dimension_numbers<[1], [1], [0], [0], [0, 0, 1, 0], [], []>} : vector<16x32xf32>, vector<32x32xf32>, vector<16x32xf32> -> vector<16x32xf32>
    %c0_3 = arith.constant 0 : index
    %c0_4 = arith.constant 0 : index
    %3 = vector.load %arg3[%c0_3, %c0_4] : memref<1x32xf32, #tpu.memory_space<vmem>>, vector<1x32xf32>
    %4 = vector.broadcast %3 : vector<1x32xf32> to vector<16x32xf32>
    %5 = arith.addf %2, %4 : vector<16x32xf32>
    %c0_5 = arith.constant 0 : index
    %c0_6 = arith.constant 0 : index
    %6 = vector.load %arg4[%c0_5, %c0_6] : memref<16x32xf32, #tpu.memory_space<vmem>>, vector<16x32xf32>
    tpu.vector_store %arg4[%c0_5, %c0_6], %5 {strides = array<i32>} : memref<16x32xf32, #tpu.memory_space<vmem>>, vector<16x32xf32>,
    return
  }
  func.func @transform_0(%arg0: i32) -> (i32, i32) {
    %c0_i32 = arith.constant 0 : i32
    %c0_i32_0 = arith.constant 0 : i32
    return %arg0, %c0_i32 : i32, i32
  }
  func.func @transform_1(%arg0: i32) -> (i32, i32) {
    %c0_i32 = arith.constant 0 : i32
    %c0_i32_0 = arith.constant 0 : i32
    %c0_i32_1 = arith.constant 0 : i32
    return %c0_i32, %c0_i32_0 : i32, i32
  }
  func.func @transform_2(%arg0: i32) -> (i32, i32) {
    %c0_i32 = arith.constant 0 : i32
    %c0_i32_0 = arith.constant 0 : i32
    %c0_i32_1 = arith.constant 0 : i32
    return %c0_i32, %c0_i32_0 : i32, i32
  }
  func.func @transform_3(%arg0: i32) -> (i32, i32) {
    %c0_i32 = arith.constant 0 : i32
    %c0_i32_0 = arith.constant 0 : i32
    return %arg0, %c0_i32 : i32, i32
  }
}

</mosaic_0001>

<llo_original>
// kernel: tpu_custom_call.1
$region0: #{tpu_custom_call.1}
  #allocation0 [shape = 'u32[]', space=smem, size = 0x4, offset = 0x4, fixed_abs, tag = 'smem constant byte address 0x4 - core index']
  #allocation1 [shape = 'u32[72,128]{1,0:T(1,128)}', space=vmem, size = 0x9000, scoped, tag = 'internal scratch']
  %s0 = inlined_call_operand.hbm [shape: f32[16,32], index: 0, kind: input, shape index: {}]
  %s1 = inlined_call_operand.hbm [shape: f32[32,32], index: 1, kind: input, shape index: {}]
  %s2 = inlined_call_operand.vmem [shape: f32[1,32], index: 2, kind: input, shape index: {}]
  %s3 = inlined_call_operand.hbm [shape: f32[16,32], index: 3, kind: output, shape index: {}]
  %s4 = sld [smem:[#allocation0]]
  $region30: #{tpu_custom_call.1} parent=0
    _
  %s6 = ssub.s32 1, %s4
  %s7 = scalar_select 0, %s6, %s4
  $region1: #{tpu_custom_call.1} parent=0
    #allocation2 [shape = 'u8[8192]{0}', space=vmem, size = 0x2000, scoped, tag = 'input window, operand 0, single buffered']
    #allocation3 [shape = 's32[1]{0}', space=sflag, size = 0x4, scoped, tag = 'scoped memory for tpu_custom_call.1']
    #allocation4 [shape = 's32[1]{0}', space=sflag, size = 0x4, scoped, tag = 'scoped memory for tpu_custom_call.1']
    #allocation5 [shape = 'u8[16384]{0}', space=vmem, size = 0x4000, scoped, tag = 'input window, operand 1, single buffered']
    #allocation6 [shape = 's32[1]{0}', space=sflag, size = 0x4, scoped, tag = 'scoped memory for tpu_custom_call.1']
    #allocation7 [shape = 'u8[8192]{0}', space=vmem, size = 0x2000, scoped, tag = 'output window, operand 0, single buffered']
    %8 = vsyncpa [#allocation3], 0
    %9 = vsyncpa [#allocation6], 0
    %10 = vsyncpa [#allocation4], 0
    // Predicated region
    $region2: #{tpu_custom_call.1} parent=1 // pred_check
      _
    $region3: #{tpu_custom_call.1} parent=1 // pred_check_branch
      %12 = sbr.rel (0) target = $region5
    $region4: #{tpu_custom_call.1} parent=1 // pred_region
      %14 = vsyncadd [#allocation3], 0
      %s15 = sshll.u32 %s0, 4
      %s16 = int_to_ptr.hbm [resolvable:$true] %s15
      %s17 = sshll.u32 [#allocation2], 4
      %s18 = int_to_ptr.vmem [resolvable:$true] %s17
      %23 = dma.hbm_to_vmem [thread:$0]  %s16, 256, %s18, [#allocation3], 128, 128, 8
    $region5: #{tpu_custom_call.1} parent=1 // pred_fallthru
      _
    // Predicated region
    $region6: #{tpu_custom_call.1} parent=1 // pred_check
      _
    $region7: #{tpu_custom_call.1} parent=1 // pred_check_branch
      %25 = sbr.rel (0) target = $region9
    $region8: #{tpu_custom_call.1} parent=1 // pred_region
      %27 = vsyncadd [#allocation6], 0
      %s28 = sshll.u32 %s1, 4
      %s29 = int_to_ptr.hbm [resolvable:$true] %s28
      %s30 = sshll.u32 [#allocation5], 4
      %s31 = int_to_ptr.vmem [resolvable:$true] %s30
      %36 = dma.hbm_to_vmem [thread:$0]  %s29, 512, %s31, [#allocation6], 128, 128, 8
    $region9: #{tpu_custom_call.1} parent=1 // pred_fallthru
      _
    // Predicated region
    $region10: #{tpu_custom_call.1} parent=1 // pred_check
      _
    $region11: #{tpu_custom_call.1} parent=1 // pred_check_branch
      %38 = sbr.rel (0) target = $region13
    $region12: #{tpu_custom_call.1} parent=1 // pred_region
      _
    $region13: #{tpu_custom_call.1} parent=1 // pred_fallthru
      _
    // Predicated region
    $region14: #{tpu_custom_call.1} parent=1 // pred_check
      _
    $region15: #{tpu_custom_call.1} parent=1 // pred_check_branch
      %40 = sbr.rel (0) target = $region17
    $region16: #{tpu_custom_call.1} parent=1 // pred_region
      %42 = dma.done [#allocation3], 256
    $region17: #{tpu_custom_call.1} parent=1 // pred_fallthru
      _
    // Predicated region
    $region18: #{tpu_custom_call.1} parent=1 // pred_check
      _
    $region19: #{tpu_custom_call.1} parent=1 // pred_check_branch
      %44 = sbr.rel (0) target = $region21
    $region20: #{tpu_custom_call.1} parent=1 // pred_region
      %46 = dma.done [#allocation6], 512
    $region21: #{tpu_custom_call.1} parent=1 // pred_fallthru
      _
    %v47 = vld [vmem:[#allocation2] sm:$0xff]
    %v48 = vld [vmem:[#allocation2 + $0x8] sm:$0xff]
    %v49 = vld [vmem:[#allocation5] sm:$0xff]
    %v50 = vld [vmem:[#allocation5 + $0x8] sm:$0xff]
    %v51 = vld [vmem:[#allocation5 + $0x10] sm:$0xff]
    %v52 = vld [vmem:[#allocation5 + $0x18] sm:$0xff]
    %v53 = vld [vmem:[%s2] sm:$0x1]
    %v55 = vperm.slane %v53, 0
    %vm57 = vcmask 261120
    %v59 = vsel %vm57, %v47, 0
    %v62 = vsel %vm57, %v48, 0
    %v65 = vsel %vm57, %v49, 0
    %v68 = vsel %vm57, %v50, 0
    %v71 = vsel %vm57, %v51, 0
    %v74 = vsel %vm57, %v52, 0
    %76 = vmatpush.xpose.msra.mxu0 0.0
    %77 = vmatpush.xpose.msra.mxu0 0.0
    %78 = vmatpush.xpose.msra.mxu0 0.0
    %79 = vmatpush.xpose.msra.mxu0 0.0
    %80 = vmatpush.xpose.msra.mxu0 0.0
    %81 = vmatpush.xpose.msra.mxu0 0.0
    %82 = vmatpush.xpose.msra.mxu0 0.0
    %83 = vmatpush.xpose.msra.mxu0 0.0
    %84 = vmatpush.xpose.msra.mxu0 0.0
    %85 = vmatpush.xpose.msra.mxu0 0.0
    %86 = vmatpush.xpose.msra.mxu0 0.0
    %87 = vmatpush.xpose.msra.mxu0 0.0
    %88 = vmatpush.xpose.msra.mxu0 %v74
    %89 = vmatpush.xpose.msra.mxu0 %v71
    %90 = vmatpush.xpose.msra.mxu0 %v68
    %91 = vmatpush.xpose.msra.mxu0 %v65
    %92 = vmatmul.f32.gmra.mxu0 %v59
    %v93 = vpop.f32.mrf.mxu0
    %v94 = vadd.f32 %v55, %v93
    %95 = vmatmul.f32.gmra.mxu0 %v62
    %v96 = vpop.f32.mrf.mxu0
    %v97 = vadd.f32 %v55, %v96
    %98 = vdwg.mxu0
    %99 = vst.msk [vmem:[#allocation7] sm:$0xff] %vm57, %v94
    %100 = vst.msk [vmem:[#allocation7 + $0x8] sm:$0xff] %vm57, %v97
    // Predicated region
    $region22: #{tpu_custom_call.1} parent=1 // pred_check
      _
    $region23: #{tpu_custom_call.1} parent=1 // pred_check_branch
      %102 = sbr.rel (0) target = $region25
    $region24: #{tpu_custom_call.1} parent=1 // pred_region
      %104 = vsyncadd [#allocation4], 0
      %s105 = sshll.u32 [#allocation7], 4
      %s106 = int_to_ptr.vmem [resolvable:$true] %s105
      %s107 = sshll.u32 %s3, 4
      %s108 = int_to_ptr.hbm [resolvable:$true] %s107
      %113 = dma.vmem_to_hbm [thread:$0]  %s106, 256, %s108, [#allocation4], 128, 128, 8
    $region25: #{tpu_custom_call.1} parent=1 // pred_fallthru
      _
    // Predicated region
    $region26: #{tpu_custom_call.1} parent=1 // pred_check
      _
    $region27: #{tpu_custom_call.1} parent=1 // pred_check_branch
      %115 = sbr.rel (0) target = $region29
    $region28: #{tpu_custom_call.1} parent=1 // pred_region
      %117 = dma.done [#allocation4], 256
    $region29: #{tpu_custom_call.1} parent=1 // pred_fallthru
      _
    %118 = vsyncpa [#allocation3], 1
    %119 = vsyncpa [#allocation6], 1
    %120 = vsyncpa [#allocation4], 1

</llo_original>
